<compile_context>
chip_gen: v7x
topology: tpu7x:2x2x1
jax: 0.10.0
libtpu: 0.0.40
codegen_flags: <defaults>
</compile_context>

<pallas_src>
import jax
import jax.numpy as jnp
from jax.experimental import pallas as pl
from jax.experimental.pallas import tpu as pltpu

TAU = 2.0
V_THRESHOLD = 1.0
LANE = 128


def _round_up(n, m):
    return ((n + m - 1) // m) * m


def _cdiv(a, b):
    return -(-a // b)


def _audio_duration_kernel(x_ref, w1_ref, thr_ref, w2_ref, b2_ref, o_ref):
    # Encoder matmul in f32. 1/tau is folded into w1, b1 is folded into the
    # per-unit threshold, so the MXU result compares directly against thr.
    v = jnp.dot(x_ref[...], w1_ref[...], preferred_element_type=jnp.float32)

    # LIF fire: heaviside(v - thresh). f32 comparison on the VPU; cast to bf16
    # is exact (values are 0/1) and feeds the decoder MXU pass directly.
    spikes = (v >= thr_ref[...]).astype(jnp.bfloat16)

    # Decoder matmul, bf16 operands, f32 accumulation; lane-dense (tb, 128)
    # compute, but only the real output lanes are stored to HBM.
    out = jnp.dot(spikes, w2_ref[...], preferred_element_type=jnp.float32)
    out = out + b2_ref[...]
    o_ref[...] = out[:, : o_ref.shape[1]]


def prepare_params(w1, b1, w2, b2, *, tau=TAU, v_threshold=V_THRESHOLD):
    """One-time (model init) parameter prep: fold 1/tau into w1, fold b1 into a
    per-hidden-unit threshold, pad hidden/output dims to 128 lanes, cast the
    decoder weights to bf16.  Do NOT call this per forward pass."""
    in_size, hidden = w1.shape
    out_size = w2.shape[1]
    hid_p = _round_up(hidden, LANE)
    out_p = _round_up(out_size, LANE)

    w1_p = jnp.pad(w1 * (1.0 / tau), ((0, 0), (0, hid_p - hidden)))
    # Padded columns get threshold = v_threshold while their v is 0 (padded w1
    # columns are 0), so they never spike.
    thr = v_threshold - b1 * (1.0 / tau)
    thr_p = jnp.pad(thr, ((0, 0), (0, hid_p - hidden)),
                    constant_values=float(v_threshold))
    w2_p = jnp.pad(w2, ((0, hid_p - hidden), (0, out_p - out_size))
                   ).astype(jnp.bfloat16)
    b2_p = jnp.pad(b2, ((0, 0), (0, out_p - out_size)))
    return (w1_p, thr_p, w2_p, b2_p, out_size)


def audio_duration_predictor(x, params, *, tb=1024):
    """x: (B, input_size) f32; params from prepare_params(). Returns (B, out)."""
    w1_p, thr_p, w2_p, b2_p, out_size = params
    B, in_size = x.shape
    assert w1_p.shape[0] == in_size

    # --- Batch tiling: single step for small B; even step count for large B
    # so the "parallel" axis shards evenly across v7x's two TensorCores. ---
    steps = max(1, _cdiv(B, tb))
    if steps > 1 and steps % 2 == 1:
        steps += 1
    tb = _round_up(_cdiv(B, steps), 8)          # sublane-aligned tile
    b_p = steps * tb
    x_p = jnp.pad(x, ((0, b_p - B), (0, 0))) if b_p != B else x
    grid = (steps,)

    # Advisory cost estimate so XLA can schedule around this small call.
    hid_p = w1_p.shape[1]
    out_p = w2_p.shape[1]
    flops = 2 * b_p * (in_size * hid_p + hid_p * out_p)
    bytes_accessed = (
        x_p.size * 4 + w1_p.size * 4 + thr_p.size * 4
        + w2_p.size * 2 + b2_p.size * 4 + b_p * out_size * 4
    )

    out = pl.pallas_call(
        _audio_duration_kernel,
        out_shape=jax.ShapeDtypeStruct((b_p, out_size), jnp.float32),
        grid=grid,
        in_specs=[
            pl.BlockSpec((tb, in_size), lambda i: (i, 0)),   # x: tiled over batch
            pl.BlockSpec(w1_p.shape, lambda i: (0, 0)),      # params: VMEM-resident
            pl.BlockSpec(thr_p.shape, lambda i: (0, 0)),
            pl.BlockSpec(w2_p.shape, lambda i: (0, 0)),
            pl.BlockSpec(b2_p.shape, lambda i: (0, 0)),
        ],
        out_specs=pl.BlockSpec((tb, out_size), lambda i: (i, 0)),
        compiler_params=pltpu.CompilerParams(
            dimension_semantics=("parallel",)),
        cost_estimate=pl.CostEstimate(
            flops=flops, transcendentals=0, bytes_accessed=bytes_accessed),
    )(x_p, w1_p, thr_p, w2_p, b2_p)

    return out[:B]


def reference_forward(x, w1, b1, w2, b2):
    """Pure-f32 reference matching the PyTorch module semantics."""
    h = x @ w1 + b1
    spikes = (h / TAU >= V_THRESHOLD).astype(jnp.float32)
    return spikes @ w2 + b2


def reference_forward_bf16_decoder(x, w1, b1, w2, b2):
    """Reference that mirrors the kernel's bf16 decoder operands exactly."""
    h = x @ w1 + b1
    spikes = (h / TAU >= V_THRESHOLD).astype(jnp.bfloat16)
    out = jnp.dot(spikes, w2.astype(jnp.bfloat16),
                  preferred_element_type=jnp.float32)
    return out + b2


if __name__ == "__main__":
    # Shapes consistent with the module's forward. B=128 runs as ONE grid step.
    batch, input_size, hidden_size, output_size = 128, 16, 32, 4

    key = jax.random.PRNGKey(0)
    kx, k1, kb1, k2, kb2 = jax.random.split(key, 5)

    # PyTorch Linear params, pre-transposed to (in, out) layout for the kernel.
    x = jax.random.normal(kx, (batch, input_size), dtype=jnp.float32) * 2.0
    w1 = jax.random.normal(k1, (input_size, hidden_size), dtype=jnp.float32) * 0.3
    b1 = jax.random.normal(kb1, (1, hidden_size), dtype=jnp.float32) * 0.1
    w2 = jax.random.normal(k2, (hidden_size, output_size), dtype=jnp.float32) * 0.3
    b2 = jax.random.normal(kb2, (1, output_size), dtype=jnp.float32) * 0.1

    # One-time parameter prep ("model init"), hoisted off the forward path.
    params = jax.block_until_ready(prepare_params(w1, b1, w2, b2))

    out = audio_duration_predictor(x, params)
    out = jax.block_until_ready(out)
    assert out.shape == (batch, output_size)

    # Tight check against a reference matching the kernel's bf16 decoder.
    ref_bf16 = reference_forward_bf16_decoder(x, w1, b1, w2, b2)
    assert jnp.allclose(out, ref_bf16, atol=1e-5, rtol=1e-5), \
        "mismatch vs bf16-decoder-matched reference"

    # Sanity check against the pure-f32 module semantics (tolerance covers the
    # bf16 rounding of the decoder weights only; spikes are exact).
    ref_f32 = reference_forward(x, w1, b1, w2, b2)
    assert jnp.allclose(out, ref_f32, atol=2e-2, rtol=1e-2), \
        "mismatch vs f32 module reference"

    # Secondary check: exercise the multi-step, even-grid path with a ragged
    # batch (B=150, tb=64 -> 4 steps of 40 rows, padded to 160).
    x2 = jax.random.normal(kx, (150, input_size), dtype=jnp.float32) * 2.0
    out2 = jax.block_until_ready(audio_duration_predictor(x2, params, tb=64))
    ref2 = reference_forward_bf16_decoder(x2, w1, b1, w2, b2)
    assert out2.shape == (150, output_size)
    assert jnp.allclose(out2, ref2, atol=1e-5, rtol=1e-5), \
        "mismatch on multi-step grid path"

    print("KERNEL_OK")
</pallas_src>

<mosaic_0001>
module attributes {stable_mosaic.version = 11 : i64} {
  func.func @_audio_duration_kernel(%arg0: i32, %arg1: memref<128x16xf32, #tpu.memory_space<vmem>>, %arg2: memref<16x128xf32, #tpu.memory_space<vmem>>, %arg3: memref<1x128xf32, #tpu.memory_space<vmem>>, %arg4: memref<128x128xbf16, #tpu.memory_space<vmem>>, %arg5: memref<1x128xf32, #tpu.memory_space<vmem>>, %arg6: memref<128x4xf32, #tpu.memory_space<vmem>>) attributes {dimension_semantics = [#tpu.dimension_semantics<parallel>], iteration_bounds = array<i64: 1>, scalar_prefetch = 0 : i64, scratch_operands = 0 : i64, tpu.core_type = #tpu.core_type<tc>, window_params = [{transform_indices = @transform_0, window_bounds = array<i64: 128, 16>}, {pipeline_mode = #tpu.pipeline_mode<synchronous>, transform_indices = @transform_1, window_bounds = array<i64: 16, 128>}, {pipeline_mode = #tpu.pipeline_mode<synchronous>, transform_indices = @transform_2, window_bounds = array<i64: 1, 128>}, {pipeline_mode = #tpu.pipeline_mode<synchronous>, transform_indices = @transform_3, window_bounds = array<i64: 128, 128>}, {pipeline_mode = #tpu.pipeline_mode<synchronous>, transform_indices = @transform_4, window_bounds = array<i64: 1, 128>}, {transform_indices = @transform_5, window_bounds = array<i64: 128, 4>}]} {
    %c0 = arith.constant 0 : index
    %c0_0 = arith.constant 0 : index
    %0 = vector.load %arg1[%c0, %c0_0] : memref<128x16xf32, #tpu.memory_space<vmem>>, vector<128x16xf32>
    %c0_1 = arith.constant 0 : index
    %c0_2 = arith.constant 0 : index
    %1 = vector.load %arg2[%c0_1, %c0_2] : memref<16x128xf32, #tpu.memory_space<vmem>>, vector<16x128xf32>
    %cst = arith.constant dense<0.000000e+00> : vector<128x128xf32>
    %2 = tpu.matmul %0, %1, %cst {dimension_numbers = #tpu.dot_dimension_numbers<[1], [0], [0], [1], [0, 0, 1, 1], [], []>} : vector<128x16xf32>, vector<16x128xf32>, vector<128x128xf32> -> vector<128x128xf32>
    %c0_3 = arith.constant 0 : index
    %c0_4 = arith.constant 0 : index
    %3 = vector.load %arg3[%c0_3, %c0_4] : memref<1x128xf32, #tpu.memory_space<vmem>>, vector<1x128xf32>
    %4 = vector.broadcast %3 : vector<1x128xf32> to vector<128x128xf32>
    %5 = arith.cmpf oge, %2, %4 : vector<128x128xf32>
    %6 = arith.extui %5 : vector<128x128xi1> to vector<128x128xi32>
    %7 = arith.sitofp %6 : vector<128x128xi32> to vector<128x128xf32>
    %8 = arith.truncf %7 : vector<128x128xf32> to vector<128x128xbf16>
    %c0_5 = arith.constant 0 : index
    %c0_6 = arith.constant 0 : index
    %9 = vector.load %arg4[%c0_5, %c0_6] : memref<128x128xbf16, #tpu.memory_space<vmem>>, vector<128x128xbf16>
    %cst_7 = arith.constant dense<0.000000e+00> : vector<128x128xf32>
    %10 = tpu.matmul %8, %9, %cst_7 {dimension_numbers = #tpu.dot_dimension_numbers<[1], [0], [0], [1], [0, 0, 1, 1], [], []>} : vector<128x128xbf16>, vector<128x128xbf16>, vector<128x128xf32> -> vector<128x128xf32>
    %c0_8 = arith.constant 0 : index
    %c0_9 = arith.constant 0 : index
    %11 = vector.load %arg5[%c0_8, %c0_9] : memref<1x128xf32, #tpu.memory_space<vmem>>, vector<1x128xf32>
    %12 = vector.broadcast %11 : vector<1x128xf32> to vector<128x128xf32>
    %13 = arith.addf %10, %12 : vector<128x128xf32>
    %14 = vector.extract_strided_slice %13 {offsets = [0, 0], sizes = [128, 4], strides = [1, 1]} : vector<128x128xf32> to vector<128x4xf32>
    %c0_10 = arith.constant 0 : index
    %c0_11 = arith.constant 0 : index
    %15 = vector.load %arg6[%c0_10, %c0_11] : memref<128x4xf32, #tpu.memory_space<vmem>>, vector<128x4xf32>
    tpu.vector_store %arg6[%c0_10, %c0_11], %14 {strides = array<i32>} : memref<128x4xf32, #tpu.memory_space<vmem>>, vector<128x4xf32>,
    return
  }
  func.func @transform_0(%arg0: i32) -> (i32, i32) {
    %c0_i32 = arith.constant 0 : i32
    %c0_i32_0 = arith.constant 0 : i32
    return %arg0, %c0_i32 : i32, i32
  }
  func.func @transform_1(%arg0: i32) -> (i32, i32) {
    %c0_i32 = arith.constant 0 : i32
    %c0_i32_0 = arith.constant 0 : i32
    %c0_i32_1 = arith.constant 0 : i32
    return %c0_i32, %c0_i32_0 : i32, i32
  }
  func.func @transform_2(%arg0: i32) -> (i32, i32) {
    %c0_i32 = arith.constant 0 : i32
    %c0_i32_0 = arith.constant 0 : i32
    %c0_i32_1 = arith.constant 0 : i32
    return %c0_i32, %c0_i32_0 : i32, i32
  }
  func.func @transform_3(%arg0: i32) -> (i32, i32) {
    %c0_i32 = arith.constant 0 : i32
    %c0_i32_0 = arith.constant 0 : i32
    %c0_i32_1 = arith.constant 0 : i32
    return %c0_i32, %c0_i32_0 : i32, i32
  }
  func.func @transform_4(%arg0: i32) -> (i32, i32) {
    %c0_i32 = arith.constant 0 : i32
    %c0_i32_0 = arith.constant 0 : i32
    %c0_i32_1 = arith.constant 0 : i32
    return %c0_i32, %c0_i32_0 : i32, i32
  }
  func.func @transform_5(%arg0: i32) -> (i32, i32) {
    %c0_i32 = arith.constant 0 : i32
    %c0_i32_0 = arith.constant 0 : i32
    return %arg0, %c0_i32 : i32, i32
  }
}

</mosaic_0001>

<llo_original>
// kernel: tpu_custom_call.1
$region0: #{tpu_custom_call.1}
  #allocation0 [shape = 'u32[]', space=smem, size = 0x4, offset = 0x4, fixed_abs, tag = 'smem constant byte address 0x4 - core index']
  #allocation1 [shape = 'u32[144,128]{1,0:T(1,128)}', space=vmem, size = 0x12000, scoped, tag = 'internal scratch']
  %s0 = inlined_call_operand.vmem [shape: f32[128,16], index: 0, kind: input, shape index: {}]
  %s1 = inlined_call_operand.vmem [shape: f32[16,128], index: 1, kind: input, shape index: {}]
  %s2 = inlined_call_operand.vmem [shape: f32[1,128], index: 2, kind: input, shape index: {}]
  %s3 = inlined_call_operand.vmem [shape: bf16[128,128], index: 3, kind: input, shape index: {}]
  %s4 = inlined_call_operand.vmem [shape: f32[1,128], index: 4, kind: input, shape index: {}]
  %s5 = inlined_call_operand.vmem [shape: f32[128,4], index: 5, kind: output, shape index: {}]
  %s6 = sld [smem:[#allocation0]]
  $region30: #{tpu_custom_call.1} parent=0
    _
  %s8 = ssub.s32 1, %s6
  %s9 = scalar_select 0, %s8, %s6
  // Predicated region
  $region2: #{tpu_custom_call.1} parent=0 // pred_check
    _
  $region3: #{tpu_custom_call.1} parent=0 // pred_check_branch
    %11 = sbr.rel (0) target = $region5
  $region4: #{tpu_custom_call.1} parent=0 // pred_region
    _
  $region5: #{tpu_custom_call.1} parent=0 // pred_fallthru
    _
  // Predicated region
  $region6: #{tpu_custom_call.1} parent=0 // pred_check
    _
  $region7: #{tpu_custom_call.1} parent=0 // pred_check_branch
    %13 = sbr.rel (0) target = $region9
  $region8: #{tpu_custom_call.1} parent=0 // pred_region
    _
  $region9: #{tpu_custom_call.1} parent=0 // pred_fallthru
    _
  // Predicated region
  $region10: #{tpu_custom_call.1} parent=0 // pred_check
    _
  $region11: #{tpu_custom_call.1} parent=0 // pred_check_branch
    %15 = sbr.rel (0) target = $region13
  $region12: #{tpu_custom_call.1} parent=0 // pred_region
    _
  $region13: #{tpu_custom_call.1} parent=0 // pred_fallthru
    _
  // Predicated region
  $region14: #{tpu_custom_call.1} parent=0 // pred_check
    _
  $region15: #{tpu_custom_call.1} parent=0 // pred_check_branch
    %17 = sbr.rel (0) target = $region17
  $region16: #{tpu_custom_call.1} parent=0 // pred_region
    _
  $region17: #{tpu_custom_call.1} parent=0 // pred_fallthru
    _
  // Predicated region
  $region18: #{tpu_custom_call.1} parent=0 // pred_check
    _
  $region19: #{tpu_custom_call.1} parent=0 // pred_check_branch
    %19 = sbr.rel (0) target = $region21
  $region20: #{tpu_custom_call.1} parent=0 // pred_region
    _
  $region21: #{tpu_custom_call.1} parent=0 // pred_fallthru
    _
  %v21 = vld [vmem:[%s0] sm:$0xff]
  %v22 = vld [vmem:[%s0 + $0x8] sm:$0xff]
  %v23 = vld [vmem:[%s0 + $0x10] sm:$0xff]
  %v24 = vld [vmem:[%s0 + $0x18] sm:$0xff]
  %v25 = vld [vmem:[%s0 + $0x20] sm:$0xff]
  %v26 = vld [vmem:[%s0 + $0x28] sm:$0xff]
  %v27 = vld [vmem:[%s0 + $0x30] sm:$0xff]
  %v28 = vld [vmem:[%s0 + $0x38] sm:$0xff]
  %v29 = vld [vmem:[%s0 + $0x40] sm:$0xff]
  %v30 = vld [vmem:[%s0 + $0x48] sm:$0xff]
  %v31 = vld [vmem:[%s0 + $0x50] sm:$0xff]
  %v32 = vld [vmem:[%s0 + $0x58] sm:$0xff]
  %v33 = vld [vmem:[%s0 + $0x60] sm:$0xff]
  %v34 = vld [vmem:[%s0 + $0x68] sm:$0xff]
  %v35 = vld [vmem:[%s0 + $0x70] sm:$0xff]
  %v36 = vld [vmem:[%s0 + $0x78] sm:$0xff]
  %v37 = vld [vmem:[%s1] sm:$0xff]
  %v38 = vld [vmem:[%s1 + $0x8] sm:$0xff]
  %vm39 = vcmask 130048
  %v41 = vsel %vm39, %v21, 0
  %v44 = vsel %vm39, %v22, 0
  %v47 = vsel %vm39, %v23, 0
  %v50 = vsel %vm39, %v24, 0
  %v53 = vsel %vm39, %v25, 0
  %v56 = vsel %vm39, %v26, 0
  %v59 = vsel %vm39, %v27, 0
  %v62 = vsel %vm39, %v28, 0
  %v65 = vsel %vm39, %v29, 0
  %v68 = vsel %vm39, %v30, 0
  %v71 = vsel %vm39, %v31, 0
  %v74 = vsel %vm39, %v32, 0
  %v77 = vsel %vm39, %v33, 0
  %v80 = vsel %vm39, %v34, 0
  %v83 = vsel %vm39, %v35, 0
  %v86 = vsel %vm39, %v36, 0
  %88 = vmatprep.subr.mxu0 0.0
  %89 = vmatpush1.msra.mxu0 %v37
  %90 = vmatprep.subr.mxu0 0.0
  %91 = vmatpush1.msra.mxu0 %v38
  %92 = vmatprep.subr.mxu0 0.0
  %93 = vmatpush1.msra.mxu0 0.0
  %94 = vmatprep.subr.mxu0 0.0
  %95 = vmatpush1.msra.mxu0 0.0
  %96 = vmatprep.subr.mxu0 0.0
  %97 = vmatpush1.msra.mxu0 0.0
  %98 = vmatprep.subr.mxu0 0.0
  %99 = vmatpush1.msra.mxu0 0.0
  %100 = vmatprep.subr.mxu0 0.0
  %101 = vmatpush1.msra.mxu0 0.0
  %102 = vmatprep.subr.mxu0 0.0
  %103 = vmatpush1.msra.mxu0 0.0
  %104 = vmatprep.subr.mxu0 0.0
  %105 = vmatpush1.msra.mxu0 0.0
  %106 = vmatprep.subr.mxu0 0.0
  %107 = vmatpush1.msra.mxu0 0.0
  %108 = vmatprep.subr.mxu0 0.0
  %109 = vmatpush1.msra.mxu0 0.0
  %110 = vmatprep.subr.mxu0 0.0
  %111 = vmatpush1.msra.mxu0 0.0
  %112 = vmatprep.subr.mxu0 0.0
  %113 = vmatpush1.msra.mxu0 0.0
  %114 = vmatprep.subr.mxu0 0.0
  %115 = vmatpush1.msra.mxu0 0.0
  %116 = vmatprep.subr.mxu0 0.0
  %117 = vmatpush1.msra.mxu0 0.0
  %118 = vmatprep.subr.mxu0 0.0
  %119 = vmatpush1.msra.mxu0 0.0
  %120 = vmatprep.subr.mxu0 0.0
  %121 = vmatpush1.msra.mxu0 0.0
  %122 = vmatprep.subr.mxu0 0.0
  %123 = vmatpush1.msra.mxu0 0.0
  %124 = vmatprep.subr.mxu0 0.0
  %125 = vmatpush1.msra.mxu0 0.0
  %126 = vmatprep.subr.mxu0 0.0
  %127 = vmatpush1.msra.mxu0 0.0
  %128 = vmatprep.subr.mxu0 0.0
  %129 = vmatpush1.msra.mxu0 0.0
  %130 = vmatprep.subr.mxu0 0.0
  %131 = vmatpush1.msra.mxu0 0.0
  %132 = vmatprep.subr.mxu0 0.0
  %133 = vmatpush1.msra.mxu0 0.0
  %134 = vmatprep.subr.mxu0 0.0
  %135 = vmatpush1.msra.mxu0 0.0
  %136 = vmatprep.subr.mxu0 0.0
  %137 = vmatpush1.msra.mxu0 0.0
  %138 = vmatprep.subr.mxu0 0.0
  %139 = vmatpush1.msra.mxu0 0.0
  %140 = vmatprep.subr.mxu0 0.0
  %141 = vmatpush1.msra.mxu0 0.0
  %142 = vmatprep.subr.mxu0 0.0
  %143 = vmatpush1.msra.mxu0 0.0
  %144 = vmatprep.subr.mxu0 0.0
  %145 = vmatpush1.msra.mxu0 0.0
  %146 = vmatprep.subr.mxu0 0.0
  %147 = vmatpush1.msra.mxu0 0.0
  %148 = vmatprep.subr.mxu0 0.0
  %149 = vmatpush1.msra.mxu0 0.0
  %150 = vmatprep.subr.mxu0 0.0
  %151 = vmatpush1.msra.mxu0 0.0
  %152 = vmatprep.mubr.f32.mxu0 0.0
  %153 = vmatmul.mubr.f32.gmra.mrb[0].mxu0 %v41
  %v154 = vpop.f32.mrb[0].mxu0
  %v155 = vadd.f32 0.0, %v154
  %v156 = vpop.f32.mrb[0].mxu0
  %157 = vmatprep.mubr.f32.mxu0 0.0
  %158 = vmatmul.mubr.f32.gmra.mrb[0].mxu0 %v44
  %v159 = vpop.f32.mrb[0].mxu0
  %v160 = vadd.f32 0.0, %v159
  %v161 = vpop.f32.mrb[0].mxu0
  %162 = vmatprep.mubr.f32.mxu0 0.0
  %163 = vmatmul.mubr.f32.gmra.mrb[0].mxu0 %v47
  %v164 = vpop.f32.mrb[0].mxu0
  %v165 = vadd.f32 0.0, %v164
  %v166 = vpop.f32.mrb[0].mxu0
  %167 = vmatprep.mubr.f32.mxu0 0.0
  %168 = vmatmul.mubr.f32.gmra.mrb[0].mxu0 %v50
  %v169 = vpop.f32.mrb[0].mxu0
  %v170 = vadd.f32 0.0, %v169
  %v171 = vpop.f32.mrb[0].mxu0
  %172 = vmatprep.mubr.f32.mxu0 0.0
  %173 = vmatmul.mubr.f32.gmra.mrb[0].mxu0 %v53
  %v174 = vpop.f32.mrb[0].mxu0
  %v175 = vadd.f32 0.0, %v174
  %v176 = vpop.f32.mrb[0].mxu0
  %177 = vmatprep.mubr.f32.mxu0 0.0
  %178 = vmatmul.mubr.f32.gmra.mrb[0].mxu0 %v56
  %v179 = vpop.f32.mrb[0].mxu0
  %v180 = vadd.f32 0.0, %v179
  %v181 = vpop.f32.mrb[0].mxu0
  %182 = vmatprep.mubr.f32.mxu0 0.0
  %183 = vmatmul.mubr.f32.gmra.mrb[0].mxu0 %v59
  %v184 = vpop.f32.mrb[0].mxu0
  %v185 = vadd.f32 0.0, %v184
  %v186 = vpop.f32.mrb[0].mxu0
  %187 = vmatprep.mubr.f32.mxu0 0.0
  %188 = vmatmul.mubr.f32.gmra.mrb[0].mxu0 %v62
  %v189 = vpop.f32.mrb[0].mxu0
  %v190 = vadd.f32 0.0, %v189
  %v191 = vpop.f32.mrb[0].mxu0
  %192 = vmatprep.mubr.f32.mxu0 0.0
  %193 = vmatmul.mubr.f32.gmra.mrb[0].mxu0 %v65
  %v194 = vpop.f32.mrb[0].mxu0
  %v195 = vadd.f32 0.0, %v194
  %v196 = vpop.f32.mrb[0].mxu0
  %197 = vmatprep.mubr.f32.mxu0 0.0
  %198 = vmatmul.mubr.f32.gmra.mrb[0].mxu0 %v68
  %v199 = vpop.f32.mrb[0].mxu0
  %v200 = vadd.f32 0.0, %v199
  %v201 = vpop.f32.mrb[0].mxu0
  %202 = vmatprep.mubr.f32.mxu0 0.0
  %203 = vmatmul.mubr.f32.gmra.mrb[0].mxu0 %v71
  %v204 = vpop.f32.mrb[0].mxu0
  %v205 = vadd.f32 0.0, %v204
  %v206 = vpop.f32.mrb[0].mxu0
  %207 = vmatprep.mubr.f32.mxu0 0.0
  %208 = vmatmul.mubr.f32.gmra.mrb[0].mxu0 %v74
  %v209 = vpop.f32.mrb[0].mxu0
  %v210 = vadd.f32 0.0, %v209
  %v211 = vpop.f32.mrb[0].mxu0
  %212 = vmatprep.mubr.f32.mxu0 0.0
  %213 = vmatmul.mubr.f32.gmra.mrb[0].mxu0 %v77
  %v214 = vpop.f32.mrb[0].mxu0
  %v215 = vadd.f32 0.0, %v214
  %v216 = vpop.f32.mrb[0].mxu0
  %217 = vmatprep.mubr.f32.mxu0 0.0
  %218 = vmatmul.mubr.f32.gmra.mrb[0].mxu0 %v80
  %v219 = vpop.f32.mrb[0].mxu0
  %v220 = vadd.f32 0.0, %v219
  %v221 = vpop.f32.mrb[0].mxu0
  %222 = vmatprep.mubr.f32.mxu0 0.0
  %223 = vmatmul.mubr.f32.gmra.mrb[0].mxu0 %v83
  %v224 = vpop.f32.mrb[0].mxu0
  %v225 = vadd.f32 0.0, %v224
  %v226 = vpop.f32.mrb[0].mxu0
  %227 = vmatprep.mubr.f32.mxu0 0.0
  %228 = vmatmul.mubr.f32.gmra.mrb[0].mxu0 %v86
  %v229 = vpop.f32.mrb[0].mxu0
  %v230 = vadd.f32 0.0, %v229
  %v231 = vpop.f32.mrb[0].mxu0
  %232 = vdwg.mxu0
  %v233 = vld [vmem:[%s2] sm:$0x1]
  %v235 = vlaneseq
  %v236 = vshrl.u32 %v235, 7
  %v237 = vsub.s32 0, %v236
  %v238 = vrot.slane %v233, %v237
  %vm240 = vcmp.ge.f32.partialorder %v155, %v238
  %vm241 = vcmp.ge.f32.partialorder %v160, %v238
  %vm242 = vcmp.ge.f32.partialorder %v165, %v238
  %vm243 = vcmp.ge.f32.partialorder %v170, %v238
  %vm244 = vcmp.ge.f32.partialorder %v175, %v238
  %vm245 = vcmp.ge.f32.partialorder %v180, %v238
  %vm246 = vcmp.ge.f32.partialorder %v185, %v238
  %vm247 = vcmp.ge.f32.partialorder %v190, %v238
  %vm248 = vcmp.ge.f32.partialorder %v195, %v238
  %vm249 = vcmp.ge.f32.partialorder %v200, %v238
  %vm250 = vcmp.ge.f32.partialorder %v205, %v238
  %vm251 = vcmp.ge.f32.partialorder %v210, %v238
  %vm252 = vcmp.ge.f32.partialorder %v215, %v238
  %vm253 = vcmp.ge.f32.partialorder %v220, %v238
  %vm254 = vcmp.ge.f32.partialorder %v225, %v238
  %vm255 = vcmp.ge.f32.partialorder %v230, %v238
  %v256 = vsel %vm240, 1, 0
  %v257 = vsel %vm241, 1, 0
  %v258 = vsel %vm242, 1, 0
  %v259 = vsel %vm243, 1, 0
  %v260 = vsel %vm244, 1, 0
  %v261 = vsel %vm245, 1, 0
  %v262 = vsel %vm246, 1, 0
  %v263 = vsel %vm247, 1, 0
  %v264 = vsel %vm248, 1, 0
  %v265 = vsel %vm249, 1, 0
  %v266 = vsel %vm250, 1, 0
  %v267 = vsel %vm251, 1, 0
  %v268 = vsel %vm252, 1, 0
  %v269 = vsel %vm253, 1, 0
  %v270 = vsel %vm254, 1, 0
  %v271 = vsel %vm255, 1, 0
  %v272 = vcvt.s32.f32 %v256
  %v273 = vcvt.s32.f32 %v257
  %v274 = vcvt.s32.f32 %v258
  %v275 = vcvt.s32.f32 %v259
  %v276 = vcvt.s32.f32 %v260
  %v277 = vcvt.s32.f32 %v261
  %v278 = vcvt.s32.f32 %v262
  %v279 = vcvt.s32.f32 %v263
  %v280 = vcvt.s32.f32 %v264
  %v281 = vcvt.s32.f32 %v265
  %v282 = vcvt.s32.f32 %v266
  %v283 = vcvt.s32.f32 %v267
  %v284 = vcvt.s32.f32 %v268
  %v285 = vcvt.s32.f32 %v269
  %v286 = vcvt.s32.f32 %v270
  %v287 = vcvt.s32.f32 %v271
  %v288 = vpack.c.bf16 %v273, %v272
  %v289 = vpack.c.bf16 %v275, %v274
  %v290 = vpack.c.bf16 %v277, %v276
  %v291 = vpack.c.bf16 %v279, %v278
  %v292 = vpack.c.bf16 %v281, %v280
  %v293 = vpack.c.bf16 %v283, %v282
  %v294 = vpack.c.bf16 %v285, %v284
  %v295 = vpack.c.bf16 %v287, %v286
  %v296 = vld [vmem:[%s3] sm:$0xf]
  %v297 = vld [vmem:[%s3 + $0x4] sm:$0xf]
  %v298 = vld [vmem:[%s3 + $0x8] sm:$0xf]
  %v299 = vld [vmem:[%s3 + $0xc] sm:$0xf]
  %v300 = vld [vmem:[%s3 + $0x10] sm:$0xf]
  %v301 = vld [vmem:[%s3 + $0x14] sm:$0xf]
  %v302 = vld [vmem:[%s3 + $0x18] sm:$0xf]
  %v303 = vld [vmem:[%s3 + $0x1c] sm:$0xf]
  %v304 = vld [vmem:[%s3 + $0x20] sm:$0xf]
  %v305 = vld [vmem:[%s3 + $0x24] sm:$0xf]
  %v306 = vld [vmem:[%s3 + $0x28] sm:$0xf]
  %v307 = vld [vmem:[%s3 + $0x2c] sm:$0xf]
  %v308 = vld [vmem:[%s3 + $0x30] sm:$0xf]
  %v309 = vld [vmem:[%s3 + $0x34] sm:$0xf]
  %v310 = vld [vmem:[%s3 + $0x38] sm:$0xf]
  %v311 = vld [vmem:[%s3 + $0x3c] sm:$0xf]
  %v312 = vld [vmem:[%s4] sm:$0x1]
  %v314 = vlaneseq
  %v315 = vshrl.u32 %v314, 7
  %v316 = vsub.s32 0, %v315
  %v317 = vrot.slane %v312, %v316
  %v335 = vunpack.c.l.b16 %v296
  %v336 = vunpack.c.l.b16 %v297
  %v337 = vunpack.c.l.b16 %v298
  %v338 = vunpack.c.l.b16 %v299
  %v339 = vunpack.c.l.b16 %v300
  %v340 = vunpack.c.l.b16 %v301
  %v341 = vunpack.c.l.b16 %v302
  %v342 = vunpack.c.l.b16 %v303
  %v343 = vunpack.c.l.b16 %v304
  %v344 = vunpack.c.l.b16 %v305
  %v345 = vunpack.c.l.b16 %v306
  %v346 = vunpack.c.l.b16 %v307
  %v347 = vunpack.c.l.b16 %v308
  %v348 = vunpack.c.l.b16 %v309
  %v349 = vunpack.c.l.b16 %v310
  %v350 = vunpack.c.l.b16 %v311
  %v351 = vpack.c.b16 %v336, %v335
  %v352 = vpack.c.b16 %v338, %v337
  %v353 = vpack.c.b16 %v340, %v339
  %v354 = vpack.c.b16 %v342, %v341
  %v355 = vpack.c.b16 %v344, %v343
  %v356 = vpack.c.b16 %v346, %v345
  %v357 = vpack.c.b16 %v348, %v347
  %v358 = vpack.c.b16 %v350, %v349
  %367 = vmatprep.subr.bf16.mxu0 0
  %368 = vmatpush1.bf16.msra.mxu0 %v351
  %369 = vmatprep.subr.bf16.mxu0 0
  %370 = vmatpush1.bf16.msra.mxu0 %v352
  %371 = vmatprep.subr.bf16.mxu0 0
  %372 = vmatpush1.bf16.msra.mxu0 %v353
  %373 = vmatprep.subr.bf16.mxu0 0
  %374 = vmatpush1.bf16.msra.mxu0 %v354
  %375 = vmatprep.subr.bf16.mxu0 0
  %376 = vmatpush1.bf16.msra.mxu0 %v355
  %377 = vmatprep.subr.bf16.mxu0 0
  %378 = vmatpush1.bf16.msra.mxu0 %v356
  %379 = vmatprep.subr.bf16.mxu0 0
  %380 = vmatpush1.bf16.msra.mxu0 %v357
  %381 = vmatprep.subr.bf16.mxu0 0
  %382 = vmatpush1.bf16.msra.mxu0 %v358
  %383 = vmatprep.subr.bf16.mxu0 0
  %384 = vmatpush1.bf16.msra.mxu0 0
  %385 = vmatprep.subr.bf16.mxu0 0
  %386 = vmatpush1.bf16.msra.mxu0 0
  %387 = vmatprep.subr.bf16.mxu0 0
  %388 = vmatpush1.bf16.msra.mxu0 0
  %389 = vmatprep.subr.bf16.mxu0 0
  %390 = vmatpush1.bf16.msra.mxu0 0
  %391 = vmatprep.subr.bf16.mxu0 0
  %392 = vmatpush1.bf16.msra.mxu0 0
  %393 = vmatprep.subr.bf16.mxu0 0
  %394 = vmatpush1.bf16.msra.mxu0 0
  %395 = vmatprep.subr.bf16.mxu0 0
  %396 = vmatpush1.bf16.msra.mxu0 0
  %397 = vmatprep.subr.bf16.mxu0 0
  %398 = vmatpush1.bf16.msra.mxu0 0
  %399 = vmatprep.mubr.bf16.mxu0 0
  %400 = vmatmul.mubr.bf16.gmra.mrb[0].mxu0 %v288
  %v401 = vpop.f32.mrb[0].mxu0
  %v402 = vadd.f32 %v317, %v401
  %v403 = vpop.f32.mrb[0].mxu0
  %v404 = vpop.f32.mrb[0].mxu0
  %v405 = vadd.f32 %v317, %v404
  %v406 = vpop.f32.mrb[0].mxu0
  %407 = vmatprep.mubr.bf16.mxu0 0
  %408 = vmatmul.mubr.bf16.gmra.mrb[0].mxu0 %v289
  %v409 = vpop.f32.mrb[0].mxu0
  %v410 = vadd.f32 %v317, %v409
  %v411 = vpop.f32.mrb[0].mxu0
  %v412 = vpop.f32.mrb[0].mxu0
  %v413 = vadd.f32 %v317, %v412
  %v414 = vpop.f32.mrb[0].mxu0
  %415 = vmatprep.mubr.bf16.mxu0 0
  %416 = vmatmul.mubr.bf16.gmra.mrb[0].mxu0 %v290
  %v417 = vpop.f32.mrb[0].mxu0
  %v418 = vadd.f32 %v317, %v417
  %v419 = vpop.f32.mrb[0].mxu0
  %v420 = vpop.f32.mrb[0].mxu0
  %v421 = vadd.f32 %v317, %v420
  %v422 = vpop.f32.mrb[0].mxu0
  %423 = vmatprep.mubr.bf16.mxu0 0
  %424 = vmatmul.mubr.bf16.gmra.mrb[0].mxu0 %v291
  %v425 = vpop.f32.mrb[0].mxu0
  %v426 = vadd.f32 %v317, %v425
  %v427 = vpop.f32.mrb[0].mxu0
  %v428 = vpop.f32.mrb[0].mxu0
  %v429 = vadd.f32 %v317, %v428
  %v430 = vpop.f32.mrb[0].mxu0
  %431 = vmatprep.mubr.bf16.mxu0 0
  %432 = vmatmul.mubr.bf16.gmra.mrb[0].mxu0 %v292
  %v433 = vpop.f32.mrb[0].mxu0
  %v434 = vadd.f32 %v317, %v433
  %v435 = vpop.f32.mrb[0].mxu0
  %v436 = vpop.f32.mrb[0].mxu0
  %v437 = vadd.f32 %v317, %v436
  %v438 = vpop.f32.mrb[0].mxu0
  %439 = vmatprep.mubr.bf16.mxu0 0
  %440 = vmatmul.mubr.bf16.gmra.mrb[0].mxu0 %v293
  %v441 = vpop.f32.mrb[0].mxu0
  %v442 = vadd.f32 %v317, %v441
  %v443 = vpop.f32.mrb[0].mxu0
  %v444 = vpop.f32.mrb[0].mxu0
  %v445 = vadd.f32 %v317, %v444
  %v446 = vpop.f32.mrb[0].mxu0
  %447 = vmatprep.mubr.bf16.mxu0 0
  %448 = vmatmul.mubr.bf16.gmra.mrb[0].mxu0 %v294
  %v449 = vpop.f32.mrb[0].mxu0
  %v450 = vadd.f32 %v317, %v449
  %v451 = vpop.f32.mrb[0].mxu0
  %v452 = vpop.f32.mrb[0].mxu0
  %v453 = vadd.f32 %v317, %v452
  %v454 = vpop.f32.mrb[0].mxu0
  %455 = vmatprep.mubr.bf16.mxu0 0
  %456 = vmatmul.mubr.bf16.gmra.mrb[0].mxu0 %v295
  %v457 = vpop.f32.mrb[0].mxu0
  %v458 = vadd.f32 %v317, %v457
  %v459 = vpop.f32.mrb[0].mxu0
  %v460 = vpop.f32.mrb[0].mxu0
  %v461 = vadd.f32 %v317, %v460
  %v462 = vpop.f32.mrb[0].mxu0
  %463 = vdwg.mxu0
  %vm464 = vcmask 31744
  %465 = vst.msk [vmem:[%s5] sm:$0xff] %vm464, %v402
  %466 = vst.msk [vmem:[%s5 + $0x8] sm:$0xff] %vm464, %v405
  %467 = vst.msk [vmem:[%s5 + $0x10] sm:$0xff] %vm464, %v410
  %468 = vst.msk [vmem:[%s5 + $0x18] sm:$0xff] %vm464, %v413
  %469 = vst.msk [vmem:[%s5 + $0x20] sm:$0xff] %vm464, %v418
  %470 = vst.msk [vmem:[%s5 + $0x28] sm:$0xff] %vm464, %v421
  %471 = vst.msk [vmem:[%s5 + $0x30] sm:$0xff] %vm464, %v426
  %472 = vst.msk [vmem:[%s5 + $0x38] sm:$0xff] %vm464, %v429
  %473 = vst.msk [vmem:[%s5 + $0x40] sm:$0xff] %vm464, %v434
  %474 = vst.msk [vmem:[%s5 + $0x48] sm:$0xff] %vm464, %v437
  %475 = vst.msk [vmem:[%s5 + $0x50] sm:$0xff] %vm464, %v442
  %476 = vst.msk [vmem:[%s5 + $0x58] sm:$0xff] %vm464, %v445
  %477 = vst.msk [vmem:[%s5 + $0x60] sm:$0xff] %vm464, %v450
  %478 = vst.msk [vmem:[%s5 + $0x68] sm:$0xff] %vm464, %v453
  %479 = vst.msk [vmem:[%s5 + $0x70] sm:$0xff] %vm464, %v458
  %480 = vst.msk [vmem:[%s5 + $0x78] sm:$0xff] %vm464, %v461
  // Predicated region
  $region22: #{tpu_custom_call.1} parent=0 // pred_check
    _
  $region23: #{tpu_custom_call.1} parent=0 // pred_check_branch
    %482 = sbr.rel (0) target = $region25
  $region24: #{tpu_custom_call.1} parent=0 // pred_region
    _
  $region25: #{tpu_custom_call.1} parent=0 // pred_fallthru
    _
  // Predicated region
  $region26: #{tpu_custom_call.1} parent=0 // pred_check
    _
  $region27: #{tpu_custom_call.1} parent=0 // pred_check_branch
    %484 = sbr.rel (0) target = $region29
  $region28: #{tpu_custom_call.1} parent=0 // pred_region
    _
  $region29: #{tpu_custom_call.1} parent=0 // pred_fallthru
    _

</llo_original>
